<compile_context>
chip_gen: v7x
topology: tpu7x:2x2x1
jax: 0.10.0
libtpu: 0.0.40
codegen_flags: <defaults>
</compile_context>

<pallas_src>
import functools
import math

import jax
import jax.numpy as jnp
from jax.experimental import pallas as pl
from jax.experimental.pallas import tpu as pltpu


# ---------------------------------------------------------------------------
# "register_buffer('pe', ...)" equivalent: computed once, reused every call.
# ---------------------------------------------------------------------------
def init_positional_encoding(d_model, max_len=5000, dtype=jnp.float32):
    position = jnp.arange(max_len, dtype=jnp.float32)[:, None]            # (L, 1)
    div_term = jnp.exp(jnp.arange(d_model, dtype=jnp.float32)
                       * (-math.log(10000.0) / d_model))                  # (D,)
    ang = position * div_term[None, :]                                    # (L, D)
    return (jnp.sin(ang) + jnp.cos(ang)).astype(dtype)                    # (L, D)


# ---------------------------------------------------------------------------
# Kernel: one (seq-tile, batch-tile) block -> out = x + pe (pe broadcast over
# batch in-register; d_model stays on the 128-lane axis).
# ---------------------------------------------------------------------------
def _posenc_kernel(x_ref, pe_ref, o_ref):
    x = x_ref[...]                       # (tile_s, tile_b, D)   x.dtype
    pe = pe_ref[...]                     # (tile_s, D)           float32
    # Promotion (e.g. bf16 -> f32) and the final downcast ride free VPU slots.
    o_ref[...] = (x + pe[:, None, :]).astype(o_ref.dtype)


# ---------------------------------------------------------------------------
# Byte-budget tile sizing.
# ---------------------------------------------------------------------------
_SUBLANE_Q = {4: 8, 2: 16, 1: 32}        # second-minor padding quantum per itemsize


def _round_up(n, m):
    return -(-n // m) * m


def _block_bytes(ts, tb, d, itemsize):
    """VMEM bytes of a (ts, tb, d) block after (sublane, lane) padding."""
    return ts * _round_up(tb, _SUBLANE_Q.get(itemsize, 8)) * _round_up(d, 128) * itemsize


def _pe_bytes(ts, d, itemsize):
    return _round_up(ts, _SUBLANE_Q.get(itemsize, 8)) * _round_up(d, 128) * itemsize


def _choose_tiles(S, B, D, x_itemsize, o_itemsize, pe_itemsize,
                  budget_bytes=16 * 1024 * 1024):
    """Pick (tile_s, tile_b): biggest blocks under a VMEM byte budget (incl.
    double buffering + padding), with >=2 grid steps when possible (megacore)."""

    def footprint(ts, tb):
        return 2 * (_block_bytes(ts, tb, D, x_itemsize)
                    + _block_bytes(ts, tb, D, o_itemsize)
                    + _pe_bytes(ts, D, pe_itemsize))

    tile_s, tile_b = S, B
    # Shrink the batch tile first (keeps one pe fetch per sequence tile).
    while footprint(tile_s, tile_b) > budget_bytes and tile_b > 8:
        tile_b = max(8, _round_up(tile_b // 2, 8))
    while footprint(tile_s, tile_b) > budget_bytes and tile_s > 8:
        tile_s = max(8, _round_up(tile_s // 2, 8))
    # v7x megacore: guarantee at least 2 grid steps when the problem allows.
    if pl.cdiv(S, tile_s) * pl.cdiv(B, tile_b) < 2:
        if S >= 16:
            tile_s = _round_up(pl.cdiv(S, 2), 8)
        elif B >= 16:
            tile_b = _round_up(pl.cdiv(B, 2), 8)
    return tile_s, tile_b


# ---------------------------------------------------------------------------
# Forward wrapper.
# ---------------------------------------------------------------------------
@functools.partial(jax.jit, static_argnums=(2,))
def positional_encoding_forward(x, pe, pos=0):
    """x: (S, B, D); pe: (max_len, D); pos: static Python int.
    Returns (S, B, D) in x.dtype:  x + pe[pos : pos + S]  (broadcast over batch).
    Dropout is identity (inference mode)."""
    if x.ndim != 3:
        raise ValueError(f"x must be (seq, batch, d_model); got {x.shape}")
    S, B, D = x.shape
    max_len, pe_d = pe.shape
    if pe_d != D:
        raise ValueError(f"d_model mismatch: x has {D}, pe has {pe_d}")
    if not (0 <= pos and pos + S <= max_len):
        raise ValueError(f"pos={pos} with seq_len={S} out of range for max_len={max_len}")

    out_dtype = x.dtype                      # no result_type promotion; bf16 in -> bf16 out
    tile_s, tile_b = _choose_tiles(
        S, B, D,
        jnp.dtype(x.dtype).itemsize,
        jnp.dtype(out_dtype).itemsize,
        jnp.dtype(pe.dtype).itemsize,
    )

    # pe operand: zero-copy view of the registered buffer in the common pos==0
    # case; otherwise a small (S, D) static slice (1/B of x traffic).
    if pos == 0 and tile_s % 8 == 0:
        pe_in = pe
    else:
        pe_in = jax.lax.slice_in_dim(pe, pos, pos + S, axis=0)

    grid = (pl.cdiv(S, tile_s), pl.cdiv(B, tile_b))

    return pl.pallas_call(
        _posenc_kernel,
        out_shape=jax.ShapeDtypeStruct((S, B, D), out_dtype),
        grid=grid,
        in_specs=[
            pl.BlockSpec((tile_s, tile_b, D), lambda i, b: (i, b, 0)),
            # pe block index is constant across the inner batch axis -> fetched
            # once per sequence tile (1/B of x's HBM traffic).
            pl.BlockSpec((tile_s, D), lambda i, b: (i, 0)),
        ],
        out_specs=pl.BlockSpec((tile_s, tile_b, D), lambda i, b: (i, b, 0)),
        compiler_params=pltpu.CompilerParams(
            dimension_semantics=("parallel", "parallel"),
            vmem_limit_bytes=32 * 1024 * 1024,
        ),
    )(x, pe_in)


# ---------------------------------------------------------------------------
# Demo / self-check.
# ---------------------------------------------------------------------------
if __name__ == "__main__":
    key = jax.random.PRNGKey(0)
    S, B, D = 64, 2, 128          # (seq, batch, d_model) — transformer layout
    MAX_LEN = 5000

    pe = init_positional_encoding(D, MAX_LEN)
    x = jax.random.normal(key, (S, B, D), jnp.float32)

    out0 = positional_encoding_forward(x, pe, 0)                 # zero-copy pe path
    out7 = positional_encoding_forward(x, pe, 7)                 # sliced pe path
    out_bf = positional_encoding_forward(x.astype(jnp.bfloat16), pe, 0)   # bf16 I/O path
    out0, out7, out_bf = jax.block_until_ready((out0, out7, out_bf))

    ref0 = x + pe[0:S][:, None, :]
    ref7 = x + pe[7:7 + S][:, None, :]

    assert out0.shape == (S, B, D) and out0.dtype == x.dtype
    assert out7.shape == (S, B, D)
    assert out_bf.dtype == jnp.bfloat16
    assert bool(jnp.all(jnp.isfinite(out0))) and bool(jnp.all(jnp.isfinite(out7)))
    assert bool(jnp.allclose(out0, ref0, atol=1e-5, rtol=1e-5))
    assert bool(jnp.allclose(out7, ref7, atol=1e-5, rtol=1e-5))
    assert bool(jnp.allclose(out_bf.astype(jnp.float32), ref0, atol=5e-2, rtol=5e-2))
    print("KERNEL_OK")
</pallas_src>

<mosaic_0001>
module attributes {stable_mosaic.version = 11 : i64} {
  func.func @_posenc_kernel(%arg0: i32, %arg1: i32, %arg2: memref<32x2x128xf32, #tpu.memory_space<vmem>>, %arg3: memref<32x128xf32, #tpu.memory_space<vmem>>, %arg4: memref<32x2x128xf32, #tpu.memory_space<vmem>>) attributes {dimension_semantics = [#tpu.dimension_semantics<parallel>, #tpu.dimension_semantics<parallel>], iteration_bounds = array<i64: 2, 1>, scalar_prefetch = 0 : i64, scratch_operands = 0 : i64, tpu.core_type = #tpu.core_type<tc>, window_params = [{transform_indices = @transform_0, window_bounds = array<i64: 32, 2, 128>}, {transform_indices = @transform_1, window_bounds = array<i64: 32, 128>}, {transform_indices = @transform_2, window_bounds = array<i64: 32, 2, 128>}]} {
    %c0 = arith.constant 0 : index
    %c0_0 = arith.constant 0 : index
    %c0_1 = arith.constant 0 : index
    %0 = vector.load %arg2[%c0, %c0_0, %c0_1] : memref<32x2x128xf32, #tpu.memory_space<vmem>>, vector<32x2x128xf32>
    %c0_2 = arith.constant 0 : index
    %c0_3 = arith.constant 0 : index
    %1 = vector.load %arg3[%c0_2, %c0_3] : memref<32x128xf32, #tpu.memory_space<vmem>>, vector<32x128xf32>
    %2 = vector.shape_cast %1 : vector<32x128xf32> to vector<32x1x128xf32>
    %3 = vector.broadcast %2 : vector<32x1x128xf32> to vector<32x2x128xf32>
    %4 = arith.addf %0, %3 : vector<32x2x128xf32>
    %c0_4 = arith.constant 0 : index
    %c0_5 = arith.constant 0 : index
    %c0_6 = arith.constant 0 : index
    %5 = vector.load %arg4[%c0_4, %c0_5, %c0_6] : memref<32x2x128xf32, #tpu.memory_space<vmem>>, vector<32x2x128xf32>
    tpu.vector_store %arg4[%c0_4, %c0_5, %c0_6], %4 {strides = array<i32>} : memref<32x2x128xf32, #tpu.memory_space<vmem>>, vector<32x2x128xf32>,
    return
  }
  func.func @transform_0(%arg0: i32, %arg1: i32) -> (i32, i32, i32) {
    %c0_i32 = arith.constant 0 : i32
    %c0_i32_0 = arith.constant 0 : i32
    return %arg0, %arg1, %c0_i32 : i32, i32, i32
  }
  func.func @transform_1(%arg0: i32, %arg1: i32) -> (i32, i32) {
    %c0_i32 = arith.constant 0 : i32
    %c0_i32_0 = arith.constant 0 : i32
    return %arg0, %c0_i32 : i32, i32
  }
  func.func @transform_2(%arg0: i32, %arg1: i32) -> (i32, i32, i32) {
    %c0_i32 = arith.constant 0 : i32
    %c0_i32_0 = arith.constant 0 : i32
    return %arg0, %arg1, %c0_i32 : i32, i32, i32
  }
}

</mosaic_0001>

<llo_original>
// kernel: positional_encoding_forward.1
$region0: #{positional_encoding_forward.1}
  #allocation0 [shape = 'u32[]', space=smem, size = 0x4, offset = 0x4, fixed_abs, tag = 'smem constant byte address 0x4 - core index']
  #allocation1 [shape = 'u32[144,128]{1,0:T(1,128)}', space=vmem, size = 0x12000, scoped, tag = 'internal scratch']
  %s0 = inlined_call_operand.hbm [shape: f32[64,2,128], index: 0, kind: input, shape index: {}]
  %s1 = inlined_call_operand.hbm [shape: f32[5000,128], index: 1, kind: input, shape index: {}]
  %s2 = inlined_call_operand.hbm [shape: f32[64,2,128], index: 2, kind: output, shape index: {}]
  %s3 = sld [smem:[#allocation0]]
  $region49: #{positional_encoding_forward.1} parent=0
    _
  %s5 = ssub.s32 1, %s3
  %s6 = scalar_select 0, %s5, %s3
  $region1: #{positional_encoding_forward.1} parent=0
    #allocation2 [shape = 'u8[65536]{0}', space=vmem, size = 0x10000, scoped, tag = 'input window, operand 0']
    #allocation3 [shape = 's32[2]{0}', space=sflag, size = 0x8, scoped, tag = 'scoped memory for positional_encoding_forward.1']
    #allocation4 [shape = 's32[2]{0}', space=sflag, size = 0x8, scoped, tag = 'scoped memory for positional_encoding_forward.1']
    #allocation5 [shape = 'u8[32768]{0}', space=vmem, size = 0x8000, scoped, tag = 'input window, operand 1']
    #allocation6 [shape = 's32[2]{0}', space=sflag, size = 0x8, scoped, tag = 'scoped memory for positional_encoding_forward.1']
    #allocation7 [shape = 'u8[65536]{0}', space=vmem, size = 0x10000, scoped, tag = 'output window, operand 0']
    %7 = vsyncpa [#allocation3], 0
    %s8 = scalar_lea.sflag [#allocation3], 1
    %9 = vsyncpa %s8, 0
    %10 = vsyncpa [#allocation6], 0
    %s11 = scalar_lea.sflag [#allocation6], 1
    %12 = vsyncpa %s11, 0
    %13 = vsyncpa [#allocation4], 0
    %s14 = scalar_lea.sflag [#allocation4], 1
    %15 = vsyncpa %s14, 0
    loop: start=0, step=1, limit=4
    $region2: #{positional_encoding_forward.1} parent=1 // loop_pre_header
      _
    $region3: #{positional_encoding_forward.1} parent=1 // loop_header
      %s17 = sphi 0, %s21
      %p18 = scmp.ge.s32.totalorder %s17, 4
      %s24 = sphi 0, %s36
      %s25 = sphi 0, %s32
      %s26 = sphi 0, %s24
      %s27 = sphi 0, %s25
      %s28 = sphi 0, %s26
      %s29 = sphi 0, %s27
      %s41 = sphi 0, %s43
      %s44 = sphi 0, %s41
      %s45 = sphi 0, %s44
      %s61 = sphi 0, %s45
      %s67 = sphi 0, %s69
      %s70 = sphi 0, %s67
      %s71 = sphi 0, %s70
      %s87 = sphi 0, %s71
      %s95 = sphi 0, %s97
      %s98 = sphi 0, %s95
      %s99 = sphi 0, %s98
      %s115 = sphi 0, %s99
    $region4: #{positional_encoding_forward.1} parent=1 // loop_header_branch
      %20 = sbr.rel (%p18) target = $region8
    $region5: #{positional_encoding_forward.1} parent=1 // loop_body
      %s22 = ssub.s32 %s17, 1
      %s23 = ssub.s32 %s17, 2
      %s30 = sadd.s32 1, %s25
      %p31 = scmp.ge.s32.totalorder %s30, 1
      %s32 = scalar_select %p31, 0, %s30
      %s33 = sadd.s32 1, %s24
      %s34 = scalar_select %p31, %s33, %s24
      %p35 = scmp.ge.s32.totalorder %s34, 2
      %s36 = scalar_select %p35, 0, %s34
      %s37 = ssub.s32 %s24, %s36
      %s38 = ssub.s32 %s25, %s32
      %s39 = sor.u32 %s37, %s38
      %p40 = scmp.eq.s32.totalorder %s39, 0
      %s42 = sadd.s32 %s41, 1
      %s43 = scalar_select %p40, %s41, %s42
      %p46 = pneg %p40
      %p47 = scmp.eq.s32.totalorder %s17, 1
      %p48 = por %p46, %p47
      %p49 = scmp.ne.s32.totalorder %s41, %s44
      %p50 = scmp.eq.s32.totalorder %s17, 0
      %p51 = por %p49, %p50
      %p52 = scmp.ne.s32.totalorder %s41, %s44
      %p53 = scmp.eq.s32.totalorder %s22, 1
      %p54 = por %p52, %p53
      %p55 = scmp.ne.s32.totalorder %s44, %s45
      %p56 = scmp.eq.s32.totalorder %s22, 0
      %p57 = por %p55, %p56
      %p58 = scmp.ne.s32.totalorder %s44, %s45
      %p59 = scmp.eq.s32.totalorder %s23, 1
      %p60 = por %p58, %p59
      %p62 = scmp.ne.s32.totalorder %s45, %s61
      %p63 = scmp.eq.s32.totalorder %s23, 0
      %p64 = por %p62, %p63
      %s65 = ssub.s32 %s24, %s36
      %p66 = scmp.eq.s32.totalorder %s65, 0
      %s68 = sadd.s32 %s67, 1
      %s69 = scalar_select %p66, %s67, %s68
      %p72 = pneg %p66
      %p73 = scmp.eq.s32.totalorder %s17, 1
      %p74 = por %p72, %p73
      %p75 = scmp.ne.s32.totalorder %s67, %s70
      %p76 = scmp.eq.s32.totalorder %s17, 0
      %p77 = por %p75, %p76
      %p78 = scmp.ne.s32.totalorder %s67, %s70
      %p79 = scmp.eq.s32.totalorder %s22, 1
      %p80 = por %p78, %p79
      %p81 = scmp.ne.s32.totalorder %s70, %s71
      %p82 = scmp.eq.s32.totalorder %s22, 0
      %p83 = por %p81, %p82
      %p84 = scmp.ne.s32.totalorder %s70, %s71
      %p85 = scmp.eq.s32.totalorder %s23, 1
      %p86 = por %p84, %p85
      %p88 = scmp.ne.s32.totalorder %s71, %s87
      %p89 = scmp.eq.s32.totalorder %s23, 0
      %p90 = por %p88, %p89
      %s91 = ssub.s32 %s24, %s36
      %s92 = ssub.s32 %s25, %s32
      %s93 = sor.u32 %s91, %s92
      %p94 = scmp.eq.s32.totalorder %s93, 0
      %s96 = sadd.s32 %s95, 1
      %s97 = scalar_select %p94, %s95, %s96
      %p100 = pneg %p94
      %p101 = scmp.eq.s32.totalorder %s17, 1
      %p102 = por %p100, %p101
      %p103 = scmp.ne.s32.totalorder %s95, %s98
      %p104 = scmp.eq.s32.totalorder %s17, 0
      %p105 = por %p103, %p104
      %p106 = scmp.ne.s32.totalorder %s95, %s98
      %p107 = scmp.eq.s32.totalorder %s22, 1
      %p108 = por %p106, %p107
      %p109 = scmp.ne.s32.totalorder %s98, %s99
      %p110 = scmp.eq.s32.totalorder %s22, 0
      %p111 = por %p109, %p110
      %p112 = scmp.ne.s32.totalorder %s98, %s99
      %p113 = scmp.eq.s32.totalorder %s23, 1
      %p114 = por %p112, %p113
      %p116 = scmp.ne.s32.totalorder %s99, %s115
      %p117 = scmp.eq.s32.totalorder %s23, 0
      %p118 = por %p116, %p117
      %p119 = scmp.le.s32.totalorder 1, %s17
      %p120 = scmp.lt.s32.totalorder %s17, 3
      %p121 = pnand %p119, %p120
      %p122 = pneg %p121
      // Predicated region
      $region9: #{positional_encoding_forward.1} parent=5 // pred_check
        _
      $region10: #{positional_encoding_forward.1} parent=5 // pred_check_branch
        %124 = sbr.rel (%p121) target = $region12
      $region11: #{positional_encoding_forward.1} parent=5 // pred_region
        %s125 = ssub.s32 %s17, 1
      $region12: #{positional_encoding_forward.1} parent=5 // pred_fallthru
        _
      %p126 = scmp.lt.s32.totalorder %s17, 2
      // Predicated region
      $region13: #{positional_encoding_forward.1} parent=5 // pred_check
        %p127 = pneg %p126
      $region14: #{positional_encoding_forward.1} parent=5 // pred_check_branch
        %129 = sbr.rel (%p127) target = $region16
      $region15: #{positional_encoding_forward.1} parent=5 // pred_region
        // Predicated region
        $region17: #{positional_encoding_forward.1} parent=15 // pred_check
          %p130 = pneg %p51
        $region18: #{positional_encoding_forward.1} parent=15 // pred_check_branch
          %132 = sbr.rel (%p130) target = $region20
        $region19: #{positional_encoding_forward.1} parent=15 // pred_region
          %s133 = sand.u32 %s41, 1
          %s134 = scalar_lea.sflag [#allocation3], %s133
          %s135 = sand.u32 %s41, 1
          %s136 = smul.addr %s135, 64
          %s137 = scalar_lea.vmem [#allocation2], %s136
          %s138 = smul.u32 32, %s24
          %s140 = ssub.s32 1024, 1024
          %141 = vsyncadd %s134, %s140
          %s142 = sadd.s32 %s25, %s138
          %s143 = smul.addr %s142, 32
          %s144 = scalar_lea.hbm %s0, %s143
          %s145 = sshll.u32 %s137, 4
          %s146 = int_to_ptr.vmem [resolvable:$true] %s145
          %151 = dma.hbm_to_vmem [thread:$0]  %s144, 1024, %s146, %s134, 32, 32, 2
        $region20: #{positional_encoding_forward.1} parent=15 // pred_fallthru
          _
        // Predicated region
        $region21: #{positional_encoding_forward.1} parent=15 // pred_check
          %p152 = pneg %p77
        $region22: #{positional_encoding_forward.1} parent=15 // pred_check_branch
          %154 = sbr.rel (%p152) target = $region24
        $region23: #{positional_encoding_forward.1} parent=15 // pred_region
          %s155 = sand.u32 %s67, 1
          %s156 = scalar_lea.sflag [#allocation6], %s155
          %s157 = sand.u32 %s67, 1
          %s158 = smul.addr %s157, 32
          %s159 = scalar_lea.vmem [#allocation5], %s158
          %s160 = smul.u32 4, %s24
          %s161 = ssub.s32 625, %s160
          %p162 = scmp.lt.s32.totalorder %s161, 4
          %s163 = scalar_select %p162, %s161, 4
          %s164 = smul.u32 128, %s163
          %s166 = ssub.s32 512, %s164
          %167 = vsyncadd %s156, %s166
          %p168 = scmp.ne.s32.totalorder 0, %s164
          %s169 = smul.addr %s160, 128
          %s170 = scalar_lea.hbm %s1, %s169
          %s171 = smul.u32 8, %s163
          %s172 = sshll.u32 %s159, 4
          %s173 = int_to_ptr.vmem [resolvable:$true] %s172
          %s174 = sshll.u32 %s171, 4
          %178 = dma.hbm_to_vmem [thread:$0]  (%p168), %s170, %s174, %s173, %s156, 128, 128, 8
        $region24: #{positional_encoding_forward.1} parent=15 // pred_fallthru
          _
      $region16: #{positional_encoding_forward.1} parent=5 // pred_fallthru
        _
      %p179 = scmp.le.s32.totalorder 1, %s17
      %p180 = scmp.lt.s32.totalorder %s17, 3
      %p181 = pnand %p179, %p180
      %p182 = pneg %p181
      // Predicated region
      $region25: #{positional_encoding_forward.1} parent=5 // pred_check
        _
      $region26: #{positional_encoding_forward.1} parent=5 // pred_check_branch
        %184 = sbr.rel (%p181) target = $region28
      $region27: #{positional_encoding_forward.1} parent=5 // pred_region
        %s185 = ssub.s32 %s17, 1
        %s186 = sand.u32 %s44, 1
        %s187 = scalar_lea.sflag [#allocation3], %s186
        %s188 = sand.u32 %s44, 1
        %s189 = smul.addr %s188, 64
        %s190 = scalar_lea.vmem [#allocation2], %s189
        // Predicated region
        $region29: #{positional_encoding_forward.1} parent=27 // pred_check
          %p191 = pneg %p57
        $region30: #{positional_encoding_forward.1} parent=27 // pred_check_branch
          %193 = sbr.rel (%p191) target = $region32
        $region31: #{positional_encoding_forward.1} parent=27 // pred_region
          %194 = dma.done %s187, 1024
        $region32: #{positional_encoding_forward.1} parent=27 // pred_fallthru
          _
        %s195 = sand.u32 %s70, 1
        %s196 = scalar_lea.sflag [#allocation6], %s195
        %s197 = sand.u32 %s70, 1
        %s198 = smul.addr %s197, 32
        %s199 = scalar_lea.vmem [#allocation5], %s198
        // Predicated region
        $region33: #{positional_encoding_forward.1} parent=27 // pred_check
          %p200 = pneg %p83
        $region34: #{positional_encoding_forward.1} parent=27 // pred_check_branch
          %202 = sbr.rel (%p200) target = $region36
        $region35: #{positional_encoding_forward.1} parent=27 // pred_region
          %203 = dma.done %s196, 512
        $region36: #{positional_encoding_forward.1} parent=27 // pred_fallthru
          _
        %s204 = sand.u32 %s44, 1
        %s205 = scalar_lea.sflag [#allocation3], %s204
        %s206 = sand.u32 %s44, 1
        %s207 = smul.addr %s206, 64
        %s208 = scalar_lea.vmem [#allocation2], %s207
        %p209 = pneg %p57
        %p210 = pneg %p54
        %s211 = sand.u32 %s70, 1
        %s212 = scalar_lea.sflag [#allocation6], %s211
        %s213 = sand.u32 %s70, 1
        %s214 = smul.addr %s213, 32
        %s215 = scalar_lea.vmem [#allocation5], %s214
        %p216 = pneg %p83
        %p217 = pneg %p80
        %p218 = pneg %p111
        %p219 = pneg %p108
        %s220 = sand.u32 %s98, 1
        %s221 = scalar_lea.sflag [#allocation4], %s220
        %s222 = sand.u32 %s98, 1
        %s223 = smul.addr %s222, 64
        %s224 = scalar_lea.vmem [#allocation7], %s223
        %s225 = smul.u32 32, %s26
        %s226 = smul.u32 4, %s26
        %s227 = ssub.s32 625, %s226
        %p228 = scmp.lt.s32.totalorder %s227, 4
        %s229 = scalar_select %p228, %s227, 4
        %s230 = smul.u32 128, %s229
        %s231 = smul.u32 32, %s26
        %v232 = vld [vmem:[%s190] sm:$0x3]
        %v233 = vld [vmem:[%s190 + $0x2] sm:$0x3]
        %v234 = vld [vmem:[%s190 + $0x4] sm:$0x3]
        %v235 = vld [vmem:[%s190 + $0x6] sm:$0x3]
        %v236 = vld [vmem:[%s190 + $0x8] sm:$0x3]
        %v237 = vld [vmem:[%s190 + $0xa] sm:$0x3]
        %v238 = vld [vmem:[%s190 + $0xc] sm:$0x3]
        %v239 = vld [vmem:[%s190 + $0xe] sm:$0x3]
        %v240 = vld [vmem:[%s190 + $0x10] sm:$0x3]
        %v241 = vld [vmem:[%s190 + $0x12] sm:$0x3]
        %v242 = vld [vmem:[%s190 + $0x14] sm:$0x3]
        %v243 = vld [vmem:[%s190 + $0x16] sm:$0x3]
        %v244 = vld [vmem:[%s190 + $0x18] sm:$0x3]
        %v245 = vld [vmem:[%s190 + $0x1a] sm:$0x3]
        %v246 = vld [vmem:[%s190 + $0x1c] sm:$0x3]
        %v247 = vld [vmem:[%s190 + $0x1e] sm:$0x3]
        %v248 = vld [vmem:[%s190 + $0x20] sm:$0x3]
        %v249 = vld [vmem:[%s190 + $0x22] sm:$0x3]
        %v250 = vld [vmem:[%s190 + $0x24] sm:$0x3]
        %v251 = vld [vmem:[%s190 + $0x26] sm:$0x3]
        %v252 = vld [vmem:[%s190 + $0x28] sm:$0x3]
        %v253 = vld [vmem:[%s190 + $0x2a] sm:$0x3]
        %v254 = vld [vmem:[%s190 + $0x2c] sm:$0x3]
        %v255 = vld [vmem:[%s190 + $0x2e] sm:$0x3]
        %v256 = vld [vmem:[%s190 + $0x30] sm:$0x3]
        %v257 = vld [vmem:[%s190 + $0x32] sm:$0x3]
        %v258 = vld [vmem:[%s190 + $0x34] sm:$0x3]
        %v259 = vld [vmem:[%s190 + $0x36] sm:$0x3]
        %v260 = vld [vmem:[%s190 + $0x38] sm:$0x3]
        %v261 = vld [vmem:[%s190 + $0x3a] sm:$0x3]
        %v262 = vld [vmem:[%s190 + $0x3c] sm:$0x3]
        %v263 = vld [vmem:[%s190 + $0x3e] sm:$0x3]
        %v264 = vld [vmem:[%s199] sm:$0xff]
        %v265 = vld [vmem:[%s199 + $0x8] sm:$0xff]
        %v266 = vld [vmem:[%s199 + $0x10] sm:$0xff]
        %v267 = vld [vmem:[%s199 + $0x18] sm:$0xff]
        %v272 = vcombine.high %v264, %v264
        %v274 = vunpack.c.l.s4 1966171168
        %v275 = vunpack.c.0.s8 %v274
        %v276 = vlaneseq
        %v277 = vshrl.u32 %v276, 7
        %v278 = vsub.s32 %v275, %v277
        %v279 = vrot.slane %v264, %v278
        %v281 = vunpack.c.l.s4 1966171168
        %v282 = vunpack.c.0.s8 %v281
        %v283 = vlaneseq
        %v284 = vshrl.u32 %v283, 7
        %v285 = vsub.s32 %v282, %v284
        %v286 = vrot.slane %v272, %v285
        %v287 = vcombine.high %v279, %v279
        %v288 = vcombine.high %v286, %v286
        %v290 = vunpack.c.l.s4 1966171168
        %v291 = vunpack.c.0.s8 %v290
        %v292 = vlaneseq
        %v293 = vshrl.u32 %v292, 7
        %v294 = vsub.s32 %v291, %v293
        %v295 = vrot.slane %v279, %v294
        %v297 = vunpack.c.l.s4 1966171168
        %v298 = vunpack.c.0.s8 %v297
        %v299 = vlaneseq
        %v300 = vshrl.u32 %v299, 7
        %v301 = vsub.s32 %v298, %v300
        %v302 = vrot.slane %v286, %v301
        %v304 = vunpack.c.l.s4 1966171168
        %v305 = vunpack.c.0.s8 %v304
        %v306 = vlaneseq
        %v307 = vshrl.u32 %v306, 7
        %v308 = vsub.s32 %v305, %v307
        %v309 = vrot.slane %v287, %v308
        %v311 = vunpack.c.l.s4 1966171168
        %v312 = vunpack.c.0.s8 %v311
        %v313 = vlaneseq
        %v314 = vshrl.u32 %v313, 7
        %v315 = vsub.s32 %v312, %v314
        %v316 = vrot.slane %v288, %v315
        %v317 = vcombine.high %v295, %v295
        %v318 = vcombine.high %v302, %v302
        %v319 = vcombine.high %v309, %v309
        %v320 = vcombine.high %v316, %v316
        %v321 = vcombine.high %v265, %v265
        %v323 = vunpack.c.l.s4 1966171168
        %v324 = vunpack.c.0.s8 %v323
        %v325 = vlaneseq
        %v326 = vshrl.u32 %v325, 7
        %v327 = vsub.s32 %v324, %v326
        %v328 = vrot.slane %v265, %v327
        %v330 = vunpack.c.l.s4 1966171168
        %v331 = vunpack.c.0.s8 %v330
        %v332 = vlaneseq
        %v333 = vshrl.u32 %v332, 7
        %v334 = vsub.s32 %v331, %v333
        %v335 = vrot.slane %v321, %v334
        %v336 = vcombine.high %v328, %v328
        %v337 = vcombine.high %v335, %v335
        %v339 = vunpack.c.l.s4 1966171168
        %v340 = vunpack.c.0.s8 %v339
        %v341 = vlaneseq
        %v342 = vshrl.u32 %v341, 7
        %v343 = vsub.s32 %v340, %v342
        %v344 = vrot.slane %v328, %v343
        %v346 = vunpack.c.l.s4 1966171168
        %v347 = vunpack.c.0.s8 %v346
        %v348 = vlaneseq
        %v349 = vshrl.u32 %v348, 7
        %v350 = vsub.s32 %v347, %v349
        %v351 = vrot.slane %v335, %v350
        %v353 = vunpack.c.l.s4 1966171168
        %v354 = vunpack.c.0.s8 %v353
        %v355 = vlaneseq
        %v356 = vshrl.u32 %v355, 7
        %v357 = vsub.s32 %v354, %v356
        %v358 = vrot.slane %v336, %v357
        %v360 = vunpack.c.l.s4 1966171168
        %v361 = vunpack.c.0.s8 %v360
        %v362 = vlaneseq
        %v363 = vshrl.u32 %v362, 7
        %v364 = vsub.s32 %v361, %v363
        %v365 = vrot.slane %v337, %v364
        %v366 = vcombine.high %v344, %v344
        %v367 = vcombine.high %v351, %v351
        %v368 = vcombine.high %v358, %v358
        %v369 = vcombine.high %v365, %v365
        %v370 = vcombine.high %v266, %v266
        %v372 = vunpack.c.l.s4 1966171168
        %v373 = vunpack.c.0.s8 %v372
        %v374 = vlaneseq
        %v375 = vshrl.u32 %v374, 7
        %v376 = vsub.s32 %v373, %v375
        %v377 = vrot.slane %v266, %v376
        %v379 = vunpack.c.l.s4 1966171168
        %v380 = vunpack.c.0.s8 %v379
        %v381 = vlaneseq
        %v382 = vshrl.u32 %v381, 7
        %v383 = vsub.s32 %v380, %v382
        %v384 = vrot.slane %v370, %v383
        %v385 = vcombine.high %v377, %v377
        %v386 = vcombine.high %v384, %v384
        %v388 = vunpack.c.l.s4 1966171168
        %v389 = vunpack.c.0.s8 %v388
        %v390 = vlaneseq
        %v391 = vshrl.u32 %v390, 7
        %v392 = vsub.s32 %v389, %v391
        %v393 = vrot.slane %v377, %v392
        %v395 = vunpack.c.l.s4 1966171168
        %v396 = vunpack.c.0.s8 %v395
        %v397 = vlaneseq
        %v398 = vshrl.u32 %v397, 7
        %v399 = vsub.s32 %v396, %v398
        %v400 = vrot.slane %v384, %v399
        %v402 = vunpack.c.l.s4 1966171168
        %v403 = vunpack.c.0.s8 %v402
        %v404 = vlaneseq
        %v405 = vshrl.u32 %v404, 7
        %v406 = vsub.s32 %v403, %v405
        %v407 = vrot.slane %v385, %v406
        %v409 = vunpack.c.l.s4 1966171168
        %v410 = vunpack.c.0.s8 %v409
        %v411 = vlaneseq
        %v412 = vshrl.u32 %v411, 7
        %v413 = vsub.s32 %v410, %v412
        %v414 = vrot.slane %v386, %v413
        %v415 = vcombine.high %v393, %v393
        %v416 = vcombine.high %v400, %v400
        %v417 = vcombine.high %v407, %v407
        %v418 = vcombine.high %v414, %v414
        %v419 = vcombine.high %v267, %v267
        %v421 = vunpack.c.l.s4 1966171168
        %v422 = vunpack.c.0.s8 %v421
        %v423 = vlaneseq
        %v424 = vshrl.u32 %v423, 7
        %v425 = vsub.s32 %v422, %v424
        %v426 = vrot.slane %v267, %v425
        %v428 = vunpack.c.l.s4 1966171168
        %v429 = vunpack.c.0.s8 %v428
        %v430 = vlaneseq
        %v431 = vshrl.u32 %v430, 7
        %v432 = vsub.s32 %v429, %v431
        %v433 = vrot.slane %v419, %v432
        %v434 = vcombine.high %v426, %v426
        %v435 = vcombine.high %v433, %v433
        %v437 = vunpack.c.l.s4 1966171168
        %v438 = vunpack.c.0.s8 %v437
        %v439 = vlaneseq
        %v440 = vshrl.u32 %v439, 7
        %v441 = vsub.s32 %v438, %v440
        %v442 = vrot.slane %v426, %v441
        %v444 = vunpack.c.l.s4 1966171168
        %v445 = vunpack.c.0.s8 %v444
        %v446 = vlaneseq
        %v447 = vshrl.u32 %v446, 7
        %v448 = vsub.s32 %v445, %v447
        %v449 = vrot.slane %v433, %v448
        %v451 = vunpack.c.l.s4 1966171168
        %v452 = vunpack.c.0.s8 %v451
        %v453 = vlaneseq
        %v454 = vshrl.u32 %v453, 7
        %v455 = vsub.s32 %v452, %v454
        %v456 = vrot.slane %v434, %v455
        %v458 = vunpack.c.l.s4 1966171168
        %v459 = vunpack.c.0.s8 %v458
        %v460 = vlaneseq
        %v461 = vshrl.u32 %v460, 7
        %v462 = vsub.s32 %v459, %v461
        %v463 = vrot.slane %v435, %v462
        %v464 = vcombine.high %v442, %v442
        %v465 = vcombine.high %v449, %v449
        %v466 = vcombine.high %v456, %v456
        %v467 = vcombine.high %v463, %v463
        %v468 = vlaneseq
        %v469 = vshrl.u32 %v468, 7
        %v470 = vsub.s32 0, %v469
        %v471 = vrot.slane %v295, %v470
        %v472 = vlaneseq
        %v473 = vshrl.u32 %v472, 7
        %v474 = vsub.s32 0, %v473
        %v475 = vrot.slane %v309, %v474
        %v476 = vlaneseq
        %v477 = vshrl.u32 %v476, 7
        %v478 = vsub.s32 0, %v477
        %v479 = vrot.slane %v317, %v478
        %v480 = vlaneseq
        %v481 = vshrl.u32 %v480, 7
        %v482 = vsub.s32 0, %v481
        %v483 = vrot.slane %v319, %v482
        %v484 = vlaneseq
        %v485 = vshrl.u32 %v484, 7
        %v486 = vsub.s32 0, %v485
        %v487 = vrot.slane %v302, %v486
        %v488 = vlaneseq
        %v489 = vshrl.u32 %v488, 7
        %v490 = vsub.s32 0, %v489
        %v491 = vrot.slane %v316, %v490
        %v492 = vlaneseq
        %v493 = vshrl.u32 %v492, 7
        %v494 = vsub.s32 0, %v493
        %v495 = vrot.slane %v318, %v494
        %v496 = vlaneseq
        %v497 = vshrl.u32 %v496, 7
        %v498 = vsub.s32 0, %v497
        %v499 = vrot.slane %v320, %v498
        %v500 = vlaneseq
        %v501 = vshrl.u32 %v500, 7
        %v502 = vsub.s32 0, %v501
        %v503 = vrot.slane %v344, %v502
        %v504 = vlaneseq
        %v505 = vshrl.u32 %v504, 7
        %v506 = vsub.s32 0, %v505
        %v507 = vrot.slane %v358, %v506
        %v508 = vlaneseq
        %v509 = vshrl.u32 %v508, 7
        %v510 = vsub.s32 0, %v509
        %v511 = vrot.slane %v366, %v510
        %v512 = vlaneseq
        %v513 = vshrl.u32 %v512, 7
        %v514 = vsub.s32 0, %v513
        %v515 = vrot.slane %v368, %v514
        %v516 = vlaneseq
        %v517 = vshrl.u32 %v516, 7
        %v518 = vsub.s32 0, %v517
        %v519 = vrot.slane %v351, %v518
        %v520 = vlaneseq
        %v521 = vshrl.u32 %v520, 7
        %v522 = vsub.s32 0, %v521
        %v523 = vrot.slane %v365, %v522
        %v524 = vlaneseq
        %v525 = vshrl.u32 %v524, 7
        %v526 = vsub.s32 0, %v525
        %v527 = vrot.slane %v367, %v526
        %v528 = vlaneseq
        %v529 = vshrl.u32 %v528, 7
        %v530 = vsub.s32 0, %v529
        %v531 = vrot.slane %v369, %v530
        %v532 = vlaneseq
        %v533 = vshrl.u32 %v532, 7
        %v534 = vsub.s32 0, %v533
        %v535 = vrot.slane %v393, %v534
        %v536 = vlaneseq
        %v537 = vshrl.u32 %v536, 7
        %v538 = vsub.s32 0, %v537
        %v539 = vrot.slane %v407, %v538
        %v540 = vlaneseq
        %v541 = vshrl.u32 %v540, 7
        %v542 = vsub.s32 0, %v541
        %v543 = vrot.slane %v415, %v542
        %v544 = vlaneseq
        %v545 = vshrl.u32 %v544, 7
        %v546 = vsub.s32 0, %v545
        %v547 = vrot.slane %v417, %v546
        %v548 = vlaneseq
        %v549 = vshrl.u32 %v548, 7
        %v550 = vsub.s32 0, %v549
        %v551 = vrot.slane %v400, %v550
        %v552 = vlaneseq
        %v553 = vshrl.u32 %v552, 7
        %v554 = vsub.s32 0, %v553
        %v555 = vrot.slane %v414, %v554
        %v556 = vlaneseq
        %v557 = vshrl.u32 %v556, 7
        %v558 = vsub.s32 0, %v557
        %v559 = vrot.slane %v416, %v558
        %v560 = vlaneseq
        %v561 = vshrl.u32 %v560, 7
        %v562 = vsub.s32 0, %v561
        %v563 = vrot.slane %v418, %v562
        %v564 = vlaneseq
        %v565 = vshrl.u32 %v564, 7
        %v566 = vsub.s32 0, %v565
        %v567 = vrot.slane %v442, %v566
        %v568 = vlaneseq
        %v569 = vshrl.u32 %v568, 7
        %v570 = vsub.s32 0, %v569
        %v571 = vrot.slane %v456, %v570
        %v572 = vlaneseq
        %v573 = vshrl.u32 %v572, 7
        %v574 = vsub.s32 0, %v573
        %v575 = vrot.slane %v464, %v574
        %v576 = vlaneseq
        %v577 = vshrl.u32 %v576, 7
        %v578 = vsub.s32 0, %v577
        %v579 = vrot.slane %v466, %v578
        %v580 = vlaneseq
        %v581 = vshrl.u32 %v580, 7
        %v582 = vsub.s32 0, %v581
        %v583 = vrot.slane %v449, %v582
        %v584 = vlaneseq
        %v585 = vshrl.u32 %v584, 7
        %v586 = vsub.s32 0, %v585
        %v587 = vrot.slane %v463, %v586
        %v588 = vlaneseq
        %v589 = vshrl.u32 %v588, 7
        %v590 = vsub.s32 0, %v589
        %v591 = vrot.slane %v465, %v590
        %v592 = vlaneseq
        %v593 = vshrl.u32 %v592, 7
        %v594 = vsub.s32 0, %v593
        %v595 = vrot.slane %v467, %v594
        %v628 = vadd.f32 %v232, %v471
        %v629 = vadd.f32 %v233, %v475
        %v630 = vadd.f32 %v234, %v479
        %v631 = vadd.f32 %v235, %v483
        %v632 = vadd.f32 %v236, %v487
        %v633 = vadd.f32 %v237, %v491
        %v634 = vadd.f32 %v238, %v495
        %v635 = vadd.f32 %v239, %v499
        %v636 = vadd.f32 %v240, %v503
        %v637 = vadd.f32 %v241, %v507
        %v638 = vadd.f32 %v242, %v511
        %v639 = vadd.f32 %v243, %v515
        %v640 = vadd.f32 %v244, %v519
        %v641 = vadd.f32 %v245, %v523
        %v642 = vadd.f32 %v246, %v527
        %v643 = vadd.f32 %v247, %v531
        %v644 = vadd.f32 %v248, %v535
        %v645 = vadd.f32 %v249, %v539
        %v646 = vadd.f32 %v250, %v543
        %v647 = vadd.f32 %v251, %v547
        %v648 = vadd.f32 %v252, %v551
        %v649 = vadd.f32 %v253, %v555
        %v650 = vadd.f32 %v254, %v559
        %v651 = vadd.f32 %v255, %v563
        %v652 = vadd.f32 %v256, %v567
        %v653 = vadd.f32 %v257, %v571
        %v654 = vadd.f32 %v258, %v575
        %v655 = vadd.f32 %v259, %v579
        %v656 = vadd.f32 %v260, %v583
        %v657 = vadd.f32 %v261, %v587
        %v658 = vadd.f32 %v262, %v591
        %v659 = vadd.f32 %v263, %v595
        %660 = vst [vmem:[%s224] sm:$0x3] %v628
        %661 = vst [vmem:[%s224 + $0x2] sm:$0x3] %v629
        %662 = vst [vmem:[%s224 + $0x4] sm:$0x3] %v630
        %663 = vst [vmem:[%s224 + $0x6] sm:$0x3] %v631
        %664 = vst [vmem:[%s224 + $0x8] sm:$0x3] %v632
        %665 = vst [vmem:[%s224 + $0xa] sm:$0x3] %v633
        %666 = vst [vmem:[%s224 + $0xc] sm:$0x3] %v634
        %667 = vst [vmem:[%s224 + $0xe] sm:$0x3] %v635
        %668 = vst [vmem:[%s224 + $0x10] sm:$0x3] %v636
        %669 = vst [vmem:[%s224 + $0x12] sm:$0x3] %v637
        %670 = vst [vmem:[%s224 + $0x14] sm:$0x3] %v638
        %671 = vst [vmem:[%s224 + $0x16] sm:$0x3] %v639
        %672 = vst [vmem:[%s224 + $0x18] sm:$0x3] %v640
        %673 = vst [vmem:[%s224 + $0x1a] sm:$0x3] %v641
        %674 = vst [vmem:[%s224 + $0x1c] sm:$0x3] %v642
        %675 = vst [vmem:[%s224 + $0x1e] sm:$0x3] %v643
        %676 = vst [vmem:[%s224 + $0x20] sm:$0x3] %v644
        %677 = vst [vmem:[%s224 + $0x22] sm:$0x3] %v645
        %678 = vst [vmem:[%s224 + $0x24] sm:$0x3] %v646
        %679 = vst [vmem:[%s224 + $0x26] sm:$0x3] %v647
        %680 = vst [vmem:[%s224 + $0x28] sm:$0x3] %v648
        %681 = vst [vmem:[%s224 + $0x2a] sm:$0x3] %v649
        %682 = vst [vmem:[%s224 + $0x2c] sm:$0x3] %v650
        %683 = vst [vmem:[%s224 + $0x2e] sm:$0x3] %v651
        %684 = vst [vmem:[%s224 + $0x30] sm:$0x3] %v652
        %685 = vst [vmem:[%s224 + $0x32] sm:$0x3] %v653
        %686 = vst [vmem:[%s224 + $0x34] sm:$0x3] %v654
        %687 = vst [vmem:[%s224 + $0x36] sm:$0x3] %v655
        %688 = vst [vmem:[%s224 + $0x38] sm:$0x3] %v656
        %689 = vst [vmem:[%s224 + $0x3a] sm:$0x3] %v657
        %690 = vst [vmem:[%s224 + $0x3c] sm:$0x3] %v658
        %691 = vst [vmem:[%s224 + $0x3e] sm:$0x3] %v659
        %s692 = sand.u32 %s98, 1
        %s693 = scalar_lea.sflag [#allocation4], %s692
        %s694 = sand.u32 %s98, 1
        %s695 = smul.addr %s694, 64
        %s696 = scalar_lea.vmem [#allocation7], %s695
        // Predicated region
        $region37: #{positional_encoding_forward.1} parent=27 // pred_check
          %p697 = pneg %p108
        $region38: #{positional_encoding_forward.1} parent=27 // pred_check_branch
          %699 = sbr.rel (%p697) target = $region40
        $region39: #{positional_encoding_forward.1} parent=27 // pred_region
          %s700 = smul.u32 32, %s26
          %s702 = ssub.s32 1024, 1024
          %703 = vsyncadd %s693, %s702
          %s704 = sadd.s32 %s27, %s700
          %s705 = smul.addr %s704, 32
          %s706 = scalar_lea.hbm %s2, %s705
          %s707 = sshll.u32 %s696, 4
          %s708 = int_to_ptr.vmem [resolvable:$true] %s707
          %713 = dma.vmem_to_hbm [thread:$0]  %s708, 1024, %s706, %s693, 32, 32, 2
        $region40: #{positional_encoding_forward.1} parent=27 // pred_fallthru
          _
      $region28: #{positional_encoding_forward.1} parent=5 // pred_fallthru
        _
      %p714 = scmp.le.s32.totalorder 2, %s17
      // Predicated region
      $region41: #{positional_encoding_forward.1} parent=5 // pred_check
        %p715 = pneg %p714
      $region42: #{positional_encoding_forward.1} parent=5 // pred_check_branch
        %717 = sbr.rel (%p715) target = $region44
      $region43: #{positional_encoding_forward.1} parent=5 // pred_region
        %s718 = ssub.s32 %s17, 2
        // Predicated region
        $region45: #{positional_encoding_forward.1} parent=43 // pred_check
          %p719 = pneg %p114
        $region46: #{positional_encoding_forward.1} parent=43 // pred_check_branch
          %721 = sbr.rel (%p719) target = $region48
        $region47: #{positional_encoding_forward.1} parent=43 // pred_region
          %s722 = sand.u32 %s99, 1
          %s723 = scalar_lea.sflag [#allocation4], %s722
          %s724 = sand.u32 %s99, 1
          %s725 = smul.addr %s724, 64
          %s726 = scalar_lea.vmem [#allocation7], %s725
          %727 = dma.done %s723, 1024
        $region48: #{positional_encoding_forward.1} parent=43 // pred_fallthru
          _
      $region44: #{positional_encoding_forward.1} parent=5 // pred_fallthru
        _
    $region6: #{positional_encoding_forward.1} parent=1 // loop_footer
      %s21 = sadd.s32 1, %s17
    $region7: #{positional_encoding_forward.1} parent=1 // loop_footer_branch
      %16 = sbr.rel target = $region3
    $region8: #{positional_encoding_forward.1} parent=1 // loop_exit
      _
    %728 = vsyncpa [#allocation3], 1
    %s729 = scalar_lea.sflag [#allocation3], 1
    %730 = vsyncpa %s729, 1
    %731 = vsyncpa [#allocation6], 1
    %s732 = scalar_lea.sflag [#allocation6], 1
    %733 = vsyncpa %s732, 1
    %734 = vsyncpa [#allocation4], 1
    %s735 = scalar_lea.sflag [#allocation4], 1
    %736 = vsyncpa %s735, 1

</llo_original>
